<compile_context>
chip_gen: v7x
topology: tpu7x:2x2x1
jax: 0.10.0
libtpu: 0.0.40
codegen_flags: <defaults>
</compile_context>

<pallas_src>
import jax
import jax.numpy as jnp
import numpy as np
from jax import lax
from jax.experimental import pallas as pl
from jax.experimental.pallas import tpu as pltpu


def perceiver_kernel(x_ref, q_ref, wp_ref, bp_ref, wkv_ref, bkv_ref, o_ref):
    bt, S, F = x_ref.shape
    Q, Dh = q_ref.shape
    O = wkv_ref.shape[1] - Dh

    # ---- projections: one fat GEMM over all (batch, seq) rows --------------
    x2d = x_ref[...].reshape(bt * S, F)                              # (bt*S, F)
    xp = jnp.dot(x2d, wp_ref[...],
                 preferred_element_type=jnp.float32) + bp_ref[...]   # (bt*S, Dh)
    # fused key/value projection: single MXU pass, slice K and V afterwards
    kv = jnp.dot(xp, wkv_ref[...],
                 preferred_element_type=jnp.float32) + bkv_ref[...]  # (bt*S, Dh+O)

    q = q_ref[...]                                                   # (Q, Dh)

    # ---- attention, per batch element (bt is small and static) -------------
    for b in range(bt):
        rows = slice(b * S, (b + 1) * S)
        keys_b = kv[rows, :Dh]                                       # (S, Dh)
        vals_b = kv[rows, Dh:]                                       # (S, O)

        # logits: contract over Dh with keys as-is (no transpose materialized)
        logits = lax.dot_general(
            q, keys_b,
            dimension_numbers=(((1,), (1,)), ((), ())),
            preferred_element_type=jnp.float32)                      # (Q, S)

        # numerically-stable softmax over S
        m = jnp.max(logits, axis=-1, keepdims=True)
        p = jnp.exp(logits - m)
        denom = jnp.sum(p, axis=-1, keepdims=True)
        p = p * pl.reciprocal(denom, approx=True)                    # EUP vrcp

        out_b = jnp.dot(p, vals_b,
                        preferred_element_type=jnp.float32)          # (Q, O)
        o_ref[b] = out_b.astype(o_ref.dtype)


def perceiver_forward(x, queries, wp, bp, wk, bk, wv, bv, *, batch_block=None):
    B, S, F = x.shape
    Q, Dh = queries.shape
    O = wv.shape[1]

    # Fuse K/V projection weights; keep biases 2D (1, dim) for TPU layout.
    wkv = jnp.concatenate([wk, wv], axis=1)                 # (Dh, Dh+O)
    bkv = jnp.concatenate([bk, bv], axis=0).reshape(1, -1)  # (1, Dh+O)
    bp2 = bp.reshape(1, -1)                                 # (1, Dh)

    # Whole batch per grid step at these sizes (amortizes per-step overhead
    # and gives the MXU a B*S-row M dimension).
    # NOTE(v7x): when B is large, pick batch_block so grid >= 2 (both
    # TensorCores used) and size blocks against the 64 MiB VMEM budget.
    bt = B if batch_block is None else batch_block
    assert B % bt == 0, "batch must be divisible by the batch block"

    grid_spec = pltpu.PrefetchScalarGridSpec(
        num_scalar_prefetch=0,
        grid=(B // bt,),
        in_specs=[
            pl.BlockSpec((bt, S, F), lambda b: (b, 0, 0)),     # x
            pl.BlockSpec((Q, Dh),     lambda b: (0, 0)),       # queries
            pl.BlockSpec((F, Dh),     lambda b: (0, 0)),       # W_proj
            pl.BlockSpec((1, Dh),     lambda b: (0, 0)),       # b_proj
            pl.BlockSpec((Dh, Dh + O), lambda b: (0, 0)),      # W_key | W_val (fused)
            pl.BlockSpec((1, Dh + O),  lambda b: (0, 0)),      # b_key | b_val (fused)
        ],
        out_specs=pl.BlockSpec((bt, Q, O), lambda b: (b, 0, 0)),
    )
    # TODO(synk): at production sizes make the output writeback lane-dense
    # (e.g. a (bt, Q*O) slab); here the whole output is 1 KiB so the in-kernel
    # (Q,O)->(Q*O,) relayout would cost more than the masked stores it removes.

    return pl.pallas_call(
        perceiver_kernel,
        out_shape=jax.ShapeDtypeStruct((B, Q, O), jnp.float32),
        grid_spec=grid_spec,
        compiler_params=pltpu.CompilerParams(
            dimension_semantics=("parallel",)),
    )(x, queries, wp, bp2, wkv, bkv)


def reference_forward(x, queries, wp, bp, wk, bk, wv, bv):
    xp = jnp.einsum("bsf,fd->bsd", x, wp) + bp
    keys = jnp.einsum("bsd,de->bse", xp, wk) + bk
    vals = jnp.einsum("bsd,do->bso", xp, wv) + bv
    q = jnp.broadcast_to(queries[None], (x.shape[0],) + queries.shape)
    logits = jnp.einsum("bqd,bsd->bqs", q, keys)
    attn = jax.nn.softmax(logits, axis=-1)
    return jnp.einsum("bqs,bso->bqo", attn, vals)


if __name__ == "__main__":
    # Small shapes consistent with the module:
    #   feature_dim = 32  -> projected dim = 16
    #   learnable_queries = 4, seq = 8, batch = 2
    #   linear_upsample = False -> output_dim = feature_dim = 32
    B, S, F = 2, 8, 32
    Dh = F // 2
    Q = 4
    O = F

    key = jax.random.PRNGKey(0)
    ks = jax.random.split(key, 8)

    # queries: xavier_normal_ on (Q, Dh)
    q_std = jnp.sqrt(2.0 / (Q + Dh))
    queries = jax.random.normal(ks[0], (Q, Dh), jnp.float32) * q_std

    def linear_init(kw, kb, fan_in, fan_out):
        bound = 1.0 / jnp.sqrt(fan_in)
        w = jax.random.uniform(kw, (fan_in, fan_out), jnp.float32, -bound, bound)
        b = jax.random.uniform(kb, (fan_out,), jnp.float32, -bound, bound)
        return w, b

    wp, bp = linear_init(ks[1], ks[2], F, Dh)    # projection
    wk, bk = linear_init(ks[3], ks[4], Dh, Dh)   # key_projection
    wv, bv = linear_init(ks[5], ks[6], Dh, O)    # value_projection

    x = jax.random.normal(ks[7], (B, S, F), jnp.float32)

    out = perceiver_forward(x, queries, wp, bp, wk, bk, wv, bv)
    out = jax.block_until_ready(out)

    ref = reference_forward(x, queries, wp, bp, wk, bk, wv, bv)
    # Tolerance is looser than pure-f32 (5e-3) because the softmax denominator
    # uses the EUP approximate reciprocal (pl.reciprocal(approx=True)).
    np.testing.assert_allclose(np.asarray(out), np.asarray(ref),
                               rtol=5e-3, atol=5e-3)

    print("KERNEL_OK")
</pallas_src>

<mosaic_0001>
module attributes {stable_mosaic.version = 11 : i64} {
  func.func @perceiver_kernel(%arg0: i32, %arg1: memref<2x8x32xf32, #tpu.memory_space<vmem>>, %arg2: memref<4x16xf32, #tpu.memory_space<vmem>>, %arg3: memref<32x16xf32, #tpu.memory_space<vmem>>, %arg4: memref<1x16xf32, #tpu.memory_space<vmem>>, %arg5: memref<16x48xf32, #tpu.memory_space<vmem>>, %arg6: memref<1x48xf32, #tpu.memory_space<vmem>>, %arg7: memref<2x4x32xf32, #tpu.memory_space<vmem>>) attributes {dimension_semantics = [#tpu.dimension_semantics<parallel>], iteration_bounds = array<i64: 1>, scalar_prefetch = 0 : i64, scratch_operands = 0 : i64, tpu.core_type = #tpu.core_type<tc>, window_params = [{transform_indices = @transform_0, window_bounds = array<i64: 2, 8, 32>}, {pipeline_mode = #tpu.pipeline_mode<synchronous>, transform_indices = @transform_1, window_bounds = array<i64: 4, 16>}, {pipeline_mode = #tpu.pipeline_mode<synchronous>, transform_indices = @transform_2, window_bounds = array<i64: 32, 16>}, {pipeline_mode = #tpu.pipeline_mode<synchronous>, transform_indices = @transform_3, window_bounds = array<i64: 1, 16>}, {pipeline_mode = #tpu.pipeline_mode<synchronous>, transform_indices = @transform_4, window_bounds = array<i64: 16, 48>}, {pipeline_mode = #tpu.pipeline_mode<synchronous>, transform_indices = @transform_5, window_bounds = array<i64: 1, 48>}, {transform_indices = @transform_6, window_bounds = array<i64: 2, 4, 32>}]} {
    %c0 = arith.constant 0 : index
    %c0_0 = arith.constant 0 : index
    %c0_1 = arith.constant 0 : index
    %0 = vector.load %arg1[%c0, %c0_0, %c0_1] : memref<2x8x32xf32, #tpu.memory_space<vmem>>, vector<2x8x32xf32>
    %1 = vector.shape_cast %0 : vector<2x8x32xf32> to vector<16x32xf32>
    %c0_2 = arith.constant 0 : index
    %c0_3 = arith.constant 0 : index
    %2 = vector.load %arg3[%c0_2, %c0_3] : memref<32x16xf32, #tpu.memory_space<vmem>>, vector<32x16xf32>
    %cst = arith.constant dense<0.000000e+00> : vector<16x16xf32>
    %3 = tpu.matmul %1, %2, %cst {dimension_numbers = #tpu.dot_dimension_numbers<[1], [0], [0], [1], [0, 0, 1, 1], [], []>} : vector<16x32xf32>, vector<32x16xf32>, vector<16x16xf32> -> vector<16x16xf32>
    %c0_4 = arith.constant 0 : index
    %c0_5 = arith.constant 0 : index
    %4 = vector.load %arg4[%c0_4, %c0_5] : memref<1x16xf32, #tpu.memory_space<vmem>>, vector<1x16xf32>
    %5 = vector.broadcast %4 : vector<1x16xf32> to vector<16x16xf32>
    %6 = arith.addf %3, %5 : vector<16x16xf32>
    %c0_6 = arith.constant 0 : index
    %c0_7 = arith.constant 0 : index
    %7 = vector.load %arg5[%c0_6, %c0_7] : memref<16x48xf32, #tpu.memory_space<vmem>>, vector<16x48xf32>
    %cst_8 = arith.constant dense<0.000000e+00> : vector<16x48xf32>
    %8 = tpu.matmul %6, %7, %cst_8 {dimension_numbers = #tpu.dot_dimension_numbers<[1], [0], [0], [1], [0, 0, 1, 1], [], []>} : vector<16x16xf32>, vector<16x48xf32>, vector<16x48xf32> -> vector<16x48xf32>
    %c0_9 = arith.constant 0 : index
    %c0_10 = arith.constant 0 : index
    %9 = vector.load %arg6[%c0_9, %c0_10] : memref<1x48xf32, #tpu.memory_space<vmem>>, vector<1x48xf32>
    %10 = vector.broadcast %9 : vector<1x48xf32> to vector<16x48xf32>
    %11 = arith.addf %8, %10 : vector<16x48xf32>
    %c0_11 = arith.constant 0 : index
    %c0_12 = arith.constant 0 : index
    %12 = vector.load %arg2[%c0_11, %c0_12] : memref<4x16xf32, #tpu.memory_space<vmem>>, vector<4x16xf32>
    %13 = vector.extract_strided_slice %11 {offsets = [0, 0], sizes = [8, 16], strides = [1, 1]} : vector<16x48xf32> to vector<8x16xf32>
    %14 = vector.extract_strided_slice %11 {offsets = [0, 16], sizes = [8, 32], strides = [1, 1]} : vector<16x48xf32> to vector<8x32xf32>
    %cst_13 = arith.constant dense<0.000000e+00> : vector<4x8xf32>
    %15 = tpu.matmul %12, %13, %cst_13 {dimension_numbers = #tpu.dot_dimension_numbers<[1], [1], [0], [0], [0, 0, 1, 0], [], []>} : vector<4x16xf32>, vector<8x16xf32>, vector<4x8xf32> -> vector<4x8xf32>
    %cst_14 = arith.constant dense<0xFF800000> : vector<4xf32>
    %16 = vector.multi_reduction <maximumf>, %15, %cst_14 [1] : vector<4x8xf32> to vector<4xf32>
    %17 = vector.shape_cast %16 : vector<4xf32> to vector<4x1xf32>
    %18 = vector.broadcast %17 : vector<4x1xf32> to vector<4x8xf32>
    %19 = arith.subf %15, %18 : vector<4x8xf32>
    %20 = math.exp %19 : vector<4x8xf32>
    %cst_15 = arith.constant dense<0.000000e+00> : vector<4xf32>
    %21 = vector.multi_reduction <add>, %20, %cst_15 [1] : vector<4x8xf32> to vector<4xf32>
    %22 = vector.shape_cast %21 : vector<4xf32> to vector<4x1xf32>
    %23 = tpu.reciprocal %22 {approx = true} : vector<4x1xf32> -> vector<4x1xf32>
    %24 = vector.broadcast %23 : vector<4x1xf32> to vector<4x8xf32>
    %25 = arith.mulf %20, %24 : vector<4x8xf32>
    %cst_16 = arith.constant dense<0.000000e+00> : vector<4x32xf32>
    %26 = tpu.matmul %25, %14, %cst_16 {dimension_numbers = #tpu.dot_dimension_numbers<[1], [0], [0], [1], [0, 0, 1, 1], [], []>} : vector<4x8xf32>, vector<8x32xf32>, vector<4x32xf32> -> vector<4x32xf32>
    %c0_17 = arith.constant 0 : index
    %c0_18 = arith.constant 0 : index
    %c0_19 = arith.constant 0 : index
    %27 = vector.load %arg7[%c0_17, %c0_18, %c0_19] : memref<2x4x32xf32, #tpu.memory_space<vmem>>, vector<1x4x32xf32>
    %28 = vector.shape_cast %27 : vector<1x4x32xf32> to vector<4x32xf32>
    %29 = vector.shape_cast %26 : vector<4x32xf32> to vector<1x4x32xf32>
    tpu.vector_store %arg7[%c0_17, %c0_18, %c0_19], %29 {strides = array<i32>} : memref<2x4x32xf32, #tpu.memory_space<vmem>>, vector<1x4x32xf32>,
    %30 = vector.extract_strided_slice %11 {offsets = [8, 0], sizes = [8, 16], strides = [1, 1]} : vector<16x48xf32> to vector<8x16xf32>
    %31 = vector.extract_strided_slice %11 {offsets = [8, 16], sizes = [8, 32], strides = [1, 1]} : vector<16x48xf32> to vector<8x32xf32>
    %cst_20 = arith.constant dense<0.000000e+00> : vector<4x8xf32>
    %32 = tpu.matmul %12, %30, %cst_20 {dimension_numbers = #tpu.dot_dimension_numbers<[1], [1], [0], [0], [0, 0, 1, 0], [], []>} : vector<4x16xf32>, vector<8x16xf32>, vector<4x8xf32> -> vector<4x8xf32>
    %cst_21 = arith.constant dense<0xFF800000> : vector<4xf32>
    %33 = vector.multi_reduction <maximumf>, %32, %cst_21 [1] : vector<4x8xf32> to vector<4xf32>
    %34 = vector.shape_cast %33 : vector<4xf32> to vector<4x1xf32>
    %35 = vector.broadcast %34 : vector<4x1xf32> to vector<4x8xf32>
    %36 = arith.subf %32, %35 : vector<4x8xf32>
    %37 = math.exp %36 : vector<4x8xf32>
    %cst_22 = arith.constant dense<0.000000e+00> : vector<4xf32>
    %38 = vector.multi_reduction <add>, %37, %cst_22 [1] : vector<4x8xf32> to vector<4xf32>
    %39 = vector.shape_cast %38 : vector<4xf32> to vector<4x1xf32>
    %40 = tpu.reciprocal %39 {approx = true} : vector<4x1xf32> -> vector<4x1xf32>
    %41 = vector.broadcast %40 : vector<4x1xf32> to vector<4x8xf32>
    %42 = arith.mulf %37, %41 : vector<4x8xf32>
    %cst_23 = arith.constant dense<0.000000e+00> : vector<4x32xf32>
    %43 = tpu.matmul %42, %31, %cst_23 {dimension_numbers = #tpu.dot_dimension_numbers<[1], [0], [0], [1], [0, 0, 1, 1], [], []>} : vector<4x8xf32>, vector<8x32xf32>, vector<4x32xf32> -> vector<4x32xf32>
    %c1 = arith.constant 1 : index
    %c0_24 = arith.constant 0 : index
    %c0_25 = arith.constant 0 : index
    %44 = vector.load %arg7[%c1, %c0_24, %c0_25] : memref<2x4x32xf32, #tpu.memory_space<vmem>>, vector<1x4x32xf32>
    %45 = vector.shape_cast %44 : vector<1x4x32xf32> to vector<4x32xf32>
    %46 = vector.shape_cast %43 : vector<4x32xf32> to vector<1x4x32xf32>
    tpu.vector_store %arg7[%c1, %c0_24, %c0_25], %46 {strides = array<i32>} : memref<2x4x32xf32, #tpu.memory_space<vmem>>, vector<1x4x32xf32>,
    return
  }
  func.func @transform_0(%arg0: i32) -> (i32, i32, i32) {
    %c0_i32 = arith.constant 0 : i32
    %c0_i32_0 = arith.constant 0 : i32
    %c0_i32_1 = arith.constant 0 : i32
    return %arg0, %c0_i32, %c0_i32_0 : i32, i32, i32
  }
  func.func @transform_1(%arg0: i32) -> (i32, i32) {
    %c0_i32 = arith.constant 0 : i32
    %c0_i32_0 = arith.constant 0 : i32
    %c0_i32_1 = arith.constant 0 : i32
    return %c0_i32, %c0_i32_0 : i32, i32
  }
  func.func @transform_2(%arg0: i32) -> (i32, i32) {
    %c0_i32 = arith.constant 0 : i32
    %c0_i32_0 = arith.constant 0 : i32
    %c0_i32_1 = arith.constant 0 : i32
    return %c0_i32, %c0_i32_0 : i32, i32
  }
  func.func @transform_3(%arg0: i32) -> (i32, i32) {
    %c0_i32 = arith.constant 0 : i32
    %c0_i32_0 = arith.constant 0 : i32
    %c0_i32_1 = arith.constant 0 : i32
    return %c0_i32, %c0_i32_0 : i32, i32
  }
  func.func @transform_4(%arg0: i32) -> (i32, i32) {
    %c0_i32 = arith.constant 0 : i32
    %c0_i32_0 = arith.constant 0 : i32
    %c0_i32_1 = arith.constant 0 : i32
    return %c0_i32, %c0_i32_0 : i32, i32
  }
  func.func @transform_5(%arg0: i32) -> (i32, i32) {
    %c0_i32 = arith.constant 0 : i32
    %c0_i32_0 = arith.constant 0 : i32
    %c0_i32_1 = arith.constant 0 : i32
    return %c0_i32, %c0_i32_0 : i32, i32
  }
  func.func @transform_6(%arg0: i32) -> (i32, i32, i32) {
    %c0_i32 = arith.constant 0 : i32
    %c0_i32_0 = arith.constant 0 : i32
    %c0_i32_1 = arith.constant 0 : i32
    return %arg0, %c0_i32, %c0_i32_0 : i32, i32, i32
  }
}

</mosaic_0001>

<llo_original>
// kernel: tpu_custom_call.1
$region0: #{tpu_custom_call.1}
  #allocation0 [shape = 'u32[]', space=smem, size = 0x4, offset = 0x4, fixed_abs, tag = 'smem constant byte address 0x4 - core index']
  #allocation1 [shape = 'u32[144,128]{1,0:T(1,128)}', space=vmem, size = 0x12000, scoped, tag = 'internal scratch']
  %s0 = inlined_call_operand.vmem [shape: f32[2,8,32], index: 0, kind: input, shape index: {}]
  %s1 = inlined_call_operand.vmem [shape: f32[4,16], index: 1, kind: input, shape index: {}]
  %s2 = inlined_call_operand.vmem [shape: f32[32,16], index: 2, kind: input, shape index: {}]
  %s3 = inlined_call_operand.vmem [shape: f32[1,16], index: 3, kind: input, shape index: {}]
  %s4 = inlined_call_operand.vmem [shape: f32[16,48], index: 4, kind: input, shape index: {}]
  %s5 = inlined_call_operand.vmem [shape: f32[1,48], index: 5, kind: input, shape index: {}]
  %s6 = inlined_call_operand.hbm [shape: f32[2,4,32], index: 6, kind: output, shape index: {}]
  %s7 = sld [smem:[#allocation0]]
  $region34: #{tpu_custom_call.1} parent=0
    _
  %s9 = ssub.s32 1, %s7
  %s10 = scalar_select 0, %s9, %s7
  $region1: #{tpu_custom_call.1} parent=0
    #allocation2 [shape = 'u8[4096]{0}', space=vmem, size = 0x1000, scoped, tag = 'output window, operand 0, single buffered']
    #allocation3 [shape = 's32[1]{0}', space=sflag, size = 0x4, scoped, tag = 'scoped memory for tpu_custom_call.1']
    %11 = vsyncpa [#allocation3], 0
    // Predicated region
    $region2: #{tpu_custom_call.1} parent=1 // pred_check
      _
    $region3: #{tpu_custom_call.1} parent=1 // pred_check_branch
      %13 = sbr.rel (0) target = $region5
    $region4: #{tpu_custom_call.1} parent=1 // pred_region
      _
    $region5: #{tpu_custom_call.1} parent=1 // pred_fallthru
      _
    // Predicated region
    $region6: #{tpu_custom_call.1} parent=1 // pred_check
      _
    $region7: #{tpu_custom_call.1} parent=1 // pred_check_branch
      %15 = sbr.rel (0) target = $region9
    $region8: #{tpu_custom_call.1} parent=1 // pred_region
      _
    $region9: #{tpu_custom_call.1} parent=1 // pred_fallthru
      _
    // Predicated region
    $region10: #{tpu_custom_call.1} parent=1 // pred_check
      _
    $region11: #{tpu_custom_call.1} parent=1 // pred_check_branch
      %17 = sbr.rel (0) target = $region13
    $region12: #{tpu_custom_call.1} parent=1 // pred_region
      _
    $region13: #{tpu_custom_call.1} parent=1 // pred_fallthru
      _
    // Predicated region
    $region14: #{tpu_custom_call.1} parent=1 // pred_check
      _
    $region15: #{tpu_custom_call.1} parent=1 // pred_check_branch
      %19 = sbr.rel (0) target = $region17
    $region16: #{tpu_custom_call.1} parent=1 // pred_region
      _
    $region17: #{tpu_custom_call.1} parent=1 // pred_fallthru
      _
    // Predicated region
    $region18: #{tpu_custom_call.1} parent=1 // pred_check
      _
    $region19: #{tpu_custom_call.1} parent=1 // pred_check_branch
      %21 = sbr.rel (0) target = $region21
    $region20: #{tpu_custom_call.1} parent=1 // pred_region
      _
    $region21: #{tpu_custom_call.1} parent=1 // pred_fallthru
      _
    // Predicated region
    $region22: #{tpu_custom_call.1} parent=1 // pred_check
      _
    $region23: #{tpu_custom_call.1} parent=1 // pred_check_branch
      %23 = sbr.rel (0) target = $region25
    $region24: #{tpu_custom_call.1} parent=1 // pred_region
      _
    $region25: #{tpu_custom_call.1} parent=1 // pred_fallthru
      _
    %v24 = vld [vmem:[%s0] sm:$0xff]
    %v25 = vld [vmem:[%s0 + $0x8] sm:$0xff]
    %v26 = vld [vmem:[%s2] sm:$0xff]
    %v27 = vld [vmem:[%s2 + $0x8] sm:$0xff]
    %v28 = vld [vmem:[%s2 + $0x10] sm:$0xff]
    %v29 = vld [vmem:[%s2 + $0x18] sm:$0xff]
    %v30 = vld [vmem:[%s3] sm:$0x1]
    %v32 = vlaneseq
    %v33 = vshrl.u32 %v32, 7
    %v34 = vsub.s32 0, %v33
    %v35 = vrot.slane %v30, %v34
    %vm37 = vcmask 261120
    %v39 = vsel %vm37, %v24, 0
    %v42 = vsel %vm37, %v25, 0
    %44 = vmatprep.subr.mxu0 0.0
    %45 = vmatpush1.msra.mxu0 %v26
    %46 = vmatprep.subr.mxu0 0.0
    %47 = vmatpush1.msra.mxu0 %v27
    %48 = vmatprep.subr.mxu0 0.0
    %49 = vmatpush1.msra.mxu0 %v28
    %50 = vmatprep.subr.mxu0 0.0
    %51 = vmatpush1.msra.mxu0 %v29
    %52 = vmatprep.subr.mxu0 0.0
    %53 = vmatpush1.msra.mxu0 0.0
    %54 = vmatprep.subr.mxu0 0.0
    %55 = vmatpush1.msra.mxu0 0.0
    %56 = vmatprep.subr.mxu0 0.0
    %57 = vmatpush1.msra.mxu0 0.0
    %58 = vmatprep.subr.mxu0 0.0
    %59 = vmatpush1.msra.mxu0 0.0
    %60 = vmatprep.subr.mxu0 0.0
    %61 = vmatpush1.msra.mxu0 0.0
    %62 = vmatprep.subr.mxu0 0.0
    %63 = vmatpush1.msra.mxu0 0.0
    %64 = vmatprep.subr.mxu0 0.0
    %65 = vmatpush1.msra.mxu0 0.0
    %66 = vmatprep.subr.mxu0 0.0
    %67 = vmatpush1.msra.mxu0 0.0
    %68 = vmatprep.subr.mxu0 0.0
    %69 = vmatpush1.msra.mxu0 0.0
    %70 = vmatprep.subr.mxu0 0.0
    %71 = vmatpush1.msra.mxu0 0.0
    %72 = vmatprep.subr.mxu0 0.0
    %73 = vmatpush1.msra.mxu0 0.0
    %74 = vmatprep.subr.mxu0 0.0
    %75 = vmatpush1.msra.mxu0 0.0
    %76 = vmatprep.subr.mxu0 0.0
    %77 = vmatpush1.msra.mxu0 0.0
    %78 = vmatprep.subr.mxu0 0.0
    %79 = vmatpush1.msra.mxu0 0.0
    %80 = vmatprep.subr.mxu0 0.0
    %81 = vmatpush1.msra.mxu0 0.0
    %82 = vmatprep.subr.mxu0 0.0
    %83 = vmatpush1.msra.mxu0 0.0
    %84 = vmatprep.subr.mxu0 0.0
    %85 = vmatpush1.msra.mxu0 0.0
    %86 = vmatprep.subr.mxu0 0.0
    %87 = vmatpush1.msra.mxu0 0.0
    %88 = vmatprep.subr.mxu0 0.0
    %89 = vmatpush1.msra.mxu0 0.0
    %90 = vmatprep.subr.mxu0 0.0
    %91 = vmatpush1.msra.mxu0 0.0
    %92 = vmatprep.subr.mxu0 0.0
    %93 = vmatpush1.msra.mxu0 0.0
    %94 = vmatprep.subr.mxu0 0.0
    %95 = vmatpush1.msra.mxu0 0.0
    %96 = vmatprep.subr.mxu0 0.0
    %97 = vmatpush1.msra.mxu0 0.0
    %98 = vmatprep.subr.mxu0 0.0
    %99 = vmatpush1.msra.mxu0 0.0
    %100 = vmatprep.subr.mxu0 0.0
    %101 = vmatpush1.msra.mxu0 0.0
    %102 = vmatprep.subr.mxu0 0.0
    %103 = vmatpush1.msra.mxu0 0.0
    %104 = vmatprep.subr.mxu0 0.0
    %105 = vmatpush1.msra.mxu0 0.0
    %106 = vmatprep.subr.mxu0 0.0
    %107 = vmatpush1.msra.mxu0 0.0
    %108 = vmatprep.mubr.f32.mxu0 0.0
    %109 = vmatmul.mubr.f32.gmra.mrb[0].mxu0 %v39
    %v110 = vpop.f32.mrb[0].mxu0
    %v111 = vadd.f32 %v35, %v110
    %v112 = vpop.f32.mrb[0].mxu0
    %113 = vmatprep.mubr.f32.mxu0 0.0
    %114 = vmatmul.mubr.f32.gmra.mrb[0].mxu0 %v42
    %v115 = vpop.f32.mrb[0].mxu0
    %v116 = vadd.f32 %v35, %v115
    %v117 = vpop.f32.mrb[0].mxu0
    %118 = vdwg.mxu0
    %v119 = vld [vmem:[%s4] sm:$0xff]
    %v120 = vld [vmem:[%s4 + $0x8] sm:$0xff]
    %v121 = vld [vmem:[%s5] sm:$0x1]
    %v123 = vlaneseq
    %v124 = vshrl.u32 %v123, 7
    %v125 = vsub.s32 0, %v124
    %v126 = vrot.slane %v121, %v125
    %vm128 = vcmask 130048
    %v130 = vsel %vm128, %v111, 0
    %v133 = vsel %vm128, %v116, 0
    %135 = vmatprep.subr.mxu0 0.0
    %136 = vmatpush1.msra.mxu0 %v119
    %137 = vmatprep.subr.mxu0 0.0
    %138 = vmatpush1.msra.mxu0 %v120
    %139 = vmatprep.subr.mxu0 0.0
    %140 = vmatpush1.msra.mxu0 0.0
    %141 = vmatprep.subr.mxu0 0.0
    %142 = vmatpush1.msra.mxu0 0.0
    %143 = vmatprep.subr.mxu0 0.0
    %144 = vmatpush1.msra.mxu0 0.0
    %145 = vmatprep.subr.mxu0 0.0
    %146 = vmatpush1.msra.mxu0 0.0
    %147 = vmatprep.subr.mxu0 0.0
    %148 = vmatpush1.msra.mxu0 0.0
    %149 = vmatprep.subr.mxu0 0.0
    %150 = vmatpush1.msra.mxu0 0.0
    %151 = vmatprep.subr.mxu0 0.0
    %152 = vmatpush1.msra.mxu0 0.0
    %153 = vmatprep.subr.mxu0 0.0
    %154 = vmatpush1.msra.mxu0 0.0
    %155 = vmatprep.subr.mxu0 0.0
    %156 = vmatpush1.msra.mxu0 0.0
    %157 = vmatprep.subr.mxu0 0.0
    %158 = vmatpush1.msra.mxu0 0.0
    %159 = vmatprep.subr.mxu0 0.0
    %160 = vmatpush1.msra.mxu0 0.0
    %161 = vmatprep.subr.mxu0 0.0
    %162 = vmatpush1.msra.mxu0 0.0
    %163 = vmatprep.subr.mxu0 0.0
    %164 = vmatpush1.msra.mxu0 0.0
    %165 = vmatprep.subr.mxu0 0.0
    %166 = vmatpush1.msra.mxu0 0.0
    %167 = vmatprep.subr.mxu0 0.0
    %168 = vmatpush1.msra.mxu0 0.0
    %169 = vmatprep.subr.mxu0 0.0
    %170 = vmatpush1.msra.mxu0 0.0
    %171 = vmatprep.subr.mxu0 0.0
    %172 = vmatpush1.msra.mxu0 0.0
    %173 = vmatprep.subr.mxu0 0.0
    %174 = vmatpush1.msra.mxu0 0.0
    %175 = vmatprep.subr.mxu0 0.0
    %176 = vmatpush1.msra.mxu0 0.0
    %177 = vmatprep.subr.mxu0 0.0
    %178 = vmatpush1.msra.mxu0 0.0
    %179 = vmatprep.subr.mxu0 0.0
    %180 = vmatpush1.msra.mxu0 0.0
    %181 = vmatprep.subr.mxu0 0.0
    %182 = vmatpush1.msra.mxu0 0.0
    %183 = vmatprep.subr.mxu0 0.0
    %184 = vmatpush1.msra.mxu0 0.0
    %185 = vmatprep.subr.mxu0 0.0
    %186 = vmatpush1.msra.mxu0 0.0
    %187 = vmatprep.subr.mxu0 0.0
    %188 = vmatpush1.msra.mxu0 0.0
    %189 = vmatprep.subr.mxu0 0.0
    %190 = vmatpush1.msra.mxu0 0.0
    %191 = vmatprep.subr.mxu0 0.0
    %192 = vmatpush1.msra.mxu0 0.0
    %193 = vmatprep.subr.mxu0 0.0
    %194 = vmatpush1.msra.mxu0 0.0
    %195 = vmatprep.subr.mxu0 0.0
    %196 = vmatpush1.msra.mxu0 0.0
    %197 = vmatprep.subr.mxu0 0.0
    %198 = vmatpush1.msra.mxu0 0.0
    %199 = vmatprep.mubr.f32.mxu0 0.0
    %200 = vmatmul.mubr.f32.gmra.mrb[0].mxu0 %v130
    %v201 = vpop.f32.mrb[0].mxu0
    %v202 = vadd.f32 %v126, %v201
    %v203 = vpop.f32.mrb[0].mxu0
    %204 = vmatprep.mubr.f32.mxu0 0.0
    %205 = vmatmul.mubr.f32.gmra.mrb[0].mxu0 %v133
    %v206 = vpop.f32.mrb[0].mxu0
    %v207 = vadd.f32 %v126, %v206
    %v208 = vpop.f32.mrb[0].mxu0
    %209 = vdwg.mxu0
    %v210 = vld [vmem:[%s1] sm:$0xf]
    %v212 = vsel %vm128, %v210, 0
    %v215 = vsel %vm128, %v202, 0
    %217 = vmatprep.subr.mxu0 0.0
    %218 = vmatpush1.xpose.msra.mxu0 %v215
    %219 = vmatprep.subr.mxu0 0.0
    %220 = vmatpush1.xpose.msra.mxu0 0.0
    %221 = vmatprep.subr.mxu0 0.0
    %222 = vmatpush1.xpose.msra.mxu0 0.0
    %223 = vmatprep.subr.mxu0 0.0
    %224 = vmatpush1.xpose.msra.mxu0 0.0
    %225 = vmatprep.subr.mxu0 0.0
    %226 = vmatpush1.xpose.msra.mxu0 0.0
    %227 = vmatprep.subr.mxu0 0.0
    %228 = vmatpush1.xpose.msra.mxu0 0.0
    %229 = vmatprep.subr.mxu0 0.0
    %230 = vmatpush1.xpose.msra.mxu0 0.0
    %231 = vmatprep.subr.mxu0 0.0
    %232 = vmatpush1.xpose.msra.mxu0 0.0
    %233 = vmatprep.subr.mxu0 0.0
    %234 = vmatpush1.xpose.msra.mxu0 0.0
    %235 = vmatprep.subr.mxu0 0.0
    %236 = vmatpush1.xpose.msra.mxu0 0.0
    %237 = vmatprep.subr.mxu0 0.0
    %238 = vmatpush1.xpose.msra.mxu0 0.0
    %239 = vmatprep.subr.mxu0 0.0
    %240 = vmatpush1.xpose.msra.mxu0 0.0
    %241 = vmatprep.subr.mxu0 0.0
    %242 = vmatpush1.xpose.msra.mxu0 0.0
    %243 = vmatprep.subr.mxu0 0.0
    %244 = vmatpush1.xpose.msra.mxu0 0.0
    %245 = vmatprep.subr.mxu0 0.0
    %246 = vmatpush1.xpose.msra.mxu0 0.0
    %247 = vmatprep.subr.mxu0 0.0
    %248 = vmatpush1.xpose.msra.mxu0 0.0
    %249 = vmatprep.subr.mxu0 0.0
    %250 = vmatpush1.xpose.msra.mxu0 0.0
    %251 = vmatprep.subr.mxu0 0.0
    %252 = vmatpush1.xpose.msra.mxu0 0.0
    %253 = vmatprep.subr.mxu0 0.0
    %254 = vmatpush1.xpose.msra.mxu0 0.0
    %255 = vmatprep.subr.mxu0 0.0
    %256 = vmatpush1.xpose.msra.mxu0 0.0
    %257 = vmatprep.subr.mxu0 0.0
    %258 = vmatpush1.xpose.msra.mxu0 0.0
    %259 = vmatprep.subr.mxu0 0.0
    %260 = vmatpush1.xpose.msra.mxu0 0.0
    %261 = vmatprep.subr.mxu0 0.0
    %262 = vmatpush1.xpose.msra.mxu0 0.0
    %263 = vmatprep.subr.mxu0 0.0
    %264 = vmatpush1.xpose.msra.mxu0 0.0
    %265 = vmatprep.subr.mxu0 0.0
    %266 = vmatpush1.xpose.msra.mxu0 0.0
    %267 = vmatprep.subr.mxu0 0.0
    %268 = vmatpush1.xpose.msra.mxu0 0.0
    %269 = vmatprep.subr.mxu0 0.0
    %270 = vmatpush1.xpose.msra.mxu0 0.0
    %271 = vmatprep.subr.mxu0 0.0
    %272 = vmatpush1.xpose.msra.mxu0 0.0
    %273 = vmatprep.subr.mxu0 0.0
    %274 = vmatpush1.xpose.msra.mxu0 0.0
    %275 = vmatprep.subr.mxu0 0.0
    %276 = vmatpush1.xpose.msra.mxu0 0.0
    %277 = vmatprep.subr.mxu0 0.0
    %278 = vmatpush1.xpose.msra.mxu0 0.0
    %279 = vmatprep.subr.mxu0 0.0
    %280 = vmatpush1.xpose.msra.mxu0 0.0
    %281 = vmatprep.mubr.f32.mxu0 0.0
    %282 = vmatmul.mubr.f32.gmra.mrb[0].mxu0 %v212
    %v283 = vpop.f32.mrb[0].mxu0
    %v284 = vadd.f32 0.0, %v283
    %v285 = vpop.f32.mrb[0].mxu0
    %286 = vdwg.mxu0
    %vm287 = vcmask 60416
    %v288 = vsel %vm287, %v284, -inf
    %289 = vmax.xlane.f32.xlu0 %v288
    %v290 = vpop.xlane.xlu0 %289
    %v291 = vsub.f32 %v284, %v290
    %v292 = vmul.f32 %v291, 1.442695
    %v293 = vpow.pop %v292
    %v294 = vsel %vm287, %v293, 0.0
    %295 = vadd.xlane.f32.xlu0 %v294
    %v296 = vpop.xlane.xlu0 %295
    %v297 = vrcp.pop %v296
    %v298 = vmul.f32 %v293, %v297
    %299 = vrot.lane.b32.xlu0 %v202, 112
    %v300 = vpop.permute.xlu0 %299
    %vm302 = vcmask 64512
    %v304 = vsel %vm302, %v298, 0
    %306 = vmatprep.subr.mxu0 0.0
    %307 = vmatpush1.msra.mxu0 %v300
    %308 = vmatprep.subr.mxu0 0.0
    %309 = vmatpush1.msra.mxu0 0.0
    %310 = vmatprep.subr.mxu0 0.0
    %311 = vmatpush1.msra.mxu0 0.0
    %312 = vmatprep.subr.mxu0 0.0
    %313 = vmatpush1.msra.mxu0 0.0
    %314 = vmatprep.subr.mxu0 0.0
    %315 = vmatpush1.msra.mxu0 0.0
    %316 = vmatprep.subr.mxu0 0.0
    %317 = vmatpush1.msra.mxu0 0.0
    %318 = vmatprep.subr.mxu0 0.0
    %319 = vmatpush1.msra.mxu0 0.0
    %320 = vmatprep.subr.mxu0 0.0
    %321 = vmatpush1.msra.mxu0 0.0
    %322 = vmatprep.subr.mxu0 0.0
    %323 = vmatpush1.msra.mxu0 0.0
    %324 = vmatprep.subr.mxu0 0.0
    %325 = vmatpush1.msra.mxu0 0.0
    %326 = vmatprep.subr.mxu0 0.0
    %327 = vmatpush1.msra.mxu0 0.0
    %328 = vmatprep.subr.mxu0 0.0
    %329 = vmatpush1.msra.mxu0 0.0
    %330 = vmatprep.subr.mxu0 0.0
    %331 = vmatpush1.msra.mxu0 0.0
    %332 = vmatprep.subr.mxu0 0.0
    %333 = vmatpush1.msra.mxu0 0.0
    %334 = vmatprep.subr.mxu0 0.0
    %335 = vmatpush1.msra.mxu0 0.0
    %336 = vmatprep.subr.mxu0 0.0
    %337 = vmatpush1.msra.mxu0 0.0
    %338 = vmatprep.subr.mxu0 0.0
    %339 = vmatpush1.msra.mxu0 0.0
    %340 = vmatprep.subr.mxu0 0.0
    %341 = vmatpush1.msra.mxu0 0.0
    %342 = vmatprep.subr.mxu0 0.0
    %343 = vmatpush1.msra.mxu0 0.0
    %344 = vmatprep.subr.mxu0 0.0
    %345 = vmatpush1.msra.mxu0 0.0
    %346 = vmatprep.subr.mxu0 0.0
    %347 = vmatpush1.msra.mxu0 0.0
    %348 = vmatprep.subr.mxu0 0.0
    %349 = vmatpush1.msra.mxu0 0.0
    %350 = vmatprep.subr.mxu0 0.0
    %351 = vmatpush1.msra.mxu0 0.0
    %352 = vmatprep.subr.mxu0 0.0
    %353 = vmatpush1.msra.mxu0 0.0
    %354 = vmatprep.subr.mxu0 0.0
    %355 = vmatpush1.msra.mxu0 0.0
    %356 = vmatprep.subr.mxu0 0.0
    %357 = vmatpush1.msra.mxu0 0.0
    %358 = vmatprep.subr.mxu0 0.0
    %359 = vmatpush1.msra.mxu0 0.0
    %360 = vmatprep.subr.mxu0 0.0
    %361 = vmatpush1.msra.mxu0 0.0
    %362 = vmatprep.subr.mxu0 0.0
    %363 = vmatpush1.msra.mxu0 0.0
    %364 = vmatprep.subr.mxu0 0.0
    %365 = vmatpush1.msra.mxu0 0.0
    %366 = vmatprep.subr.mxu0 0.0
    %367 = vmatpush1.msra.mxu0 0.0
    %368 = vmatprep.subr.mxu0 0.0
    %369 = vmatpush1.msra.mxu0 0.0
    %370 = vmatprep.mubr.f32.mxu0 0.0
    %371 = vmatmul.mubr.f32.gmra.mrb[0].mxu0 %v304
    %v372 = vpop.f32.mrb[0].mxu0
    %v373 = vadd.f32 0.0, %v372
    %v374 = vpop.f32.mrb[0].mxu0
    %375 = vdwg.mxu0
    %vm376 = vcmask 257024
    %377 = vst.msk [vmem:[#allocation2] sm:$0xf] %vm376, %v373
    %v379 = vsel %vm128, %v207, 0
    %381 = vmatprep.subr.mxu0 0.0
    %382 = vmatpush1.xpose.msra.mxu0 %v379
    %383 = vmatprep.subr.mxu0 0.0
    %384 = vmatpush1.xpose.msra.mxu0 0.0
    %385 = vmatprep.subr.mxu0 0.0
    %386 = vmatpush1.xpose.msra.mxu0 0.0
    %387 = vmatprep.subr.mxu0 0.0
    %388 = vmatpush1.xpose.msra.mxu0 0.0
    %389 = vmatprep.subr.mxu0 0.0
    %390 = vmatpush1.xpose.msra.mxu0 0.0
    %391 = vmatprep.subr.mxu0 0.0
    %392 = vmatpush1.xpose.msra.mxu0 0.0
    %393 = vmatprep.subr.mxu0 0.0
    %394 = vmatpush1.xpose.msra.mxu0 0.0
    %395 = vmatprep.subr.mxu0 0.0
    %396 = vmatpush1.xpose.msra.mxu0 0.0
    %397 = vmatprep.subr.mxu0 0.0
    %398 = vmatpush1.xpose.msra.mxu0 0.0
    %399 = vmatprep.subr.mxu0 0.0
    %400 = vmatpush1.xpose.msra.mxu0 0.0
    %401 = vmatprep.subr.mxu0 0.0
    %402 = vmatpush1.xpose.msra.mxu0 0.0
    %403 = vmatprep.subr.mxu0 0.0
    %404 = vmatpush1.xpose.msra.mxu0 0.0
    %405 = vmatprep.subr.mxu0 0.0
    %406 = vmatpush1.xpose.msra.mxu0 0.0
    %407 = vmatprep.subr.mxu0 0.0
    %408 = vmatpush1.xpose.msra.mxu0 0.0
    %409 = vmatprep.subr.mxu0 0.0
    %410 = vmatpush1.xpose.msra.mxu0 0.0
    %411 = vmatprep.subr.mxu0 0.0
    %412 = vmatpush1.xpose.msra.mxu0 0.0
    %413 = vmatprep.subr.mxu0 0.0
    %414 = vmatpush1.xpose.msra.mxu0 0.0
    %415 = vmatprep.subr.mxu0 0.0
    %416 = vmatpush1.xpose.msra.mxu0 0.0
    %417 = vmatprep.subr.mxu0 0.0
    %418 = vmatpush1.xpose.msra.mxu0 0.0
    %419 = vmatprep.subr.mxu0 0.0
    %420 = vmatpush1.xpose.msra.mxu0 0.0
    %421 = vmatprep.subr.mxu0 0.0
    %422 = vmatpush1.xpose.msra.mxu0 0.0
    %423 = vmatprep.subr.mxu0 0.0
    %424 = vmatpush1.xpose.msra.mxu0 0.0
    %425 = vmatprep.subr.mxu0 0.0
    %426 = vmatpush1.xpose.msra.mxu0 0.0
    %427 = vmatprep.subr.mxu0 0.0
    %428 = vmatpush1.xpose.msra.mxu0 0.0
    %429 = vmatprep.subr.mxu0 0.0
    %430 = vmatpush1.xpose.msra.mxu0 0.0
    %431 = vmatprep.subr.mxu0 0.0
    %432 = vmatpush1.xpose.msra.mxu0 0.0
    %433 = vmatprep.subr.mxu0 0.0
    %434 = vmatpush1.xpose.msra.mxu0 0.0
    %435 = vmatprep.subr.mxu0 0.0
    %436 = vmatpush1.xpose.msra.mxu0 0.0
    %437 = vmatprep.subr.mxu0 0.0
    %438 = vmatpush1.xpose.msra.mxu0 0.0
    %439 = vmatprep.subr.mxu0 0.0
    %440 = vmatpush1.xpose.msra.mxu0 0.0
    %441 = vmatprep.subr.mxu0 0.0
    %442 = vmatpush1.xpose.msra.mxu0 0.0
    %443 = vmatprep.subr.mxu0 0.0
    %444 = vmatpush1.xpose.msra.mxu0 0.0
    %445 = vmatprep.mubr.f32.mxu0 0.0
    %446 = vmatmul.mubr.f32.gmra.mrb[0].mxu0 %v212
    %v447 = vpop.f32.mrb[0].mxu0
    %v448 = vadd.f32 0.0, %v447
    %v449 = vpop.f32.mrb[0].mxu0
    %450 = vdwg.mxu0
    %v451 = vsel %vm287, %v448, -inf
    %452 = vmax.xlane.f32.xlu0 %v451
    %v453 = vpop.xlane.xlu0 %452
    %v454 = vsub.f32 %v448, %v453
    %v455 = vmul.f32 %v454, 1.442695
    %v456 = vpow.pop %v455
    %v457 = vsel %vm287, %v456, 0.0
    %458 = vadd.xlane.f32.xlu0 %v457
    %v459 = vpop.xlane.xlu0 %458
    %v460 = vrcp.pop %v459
    %v461 = vmul.f32 %v456, %v460
    %462 = vrot.lane.b32.xlu0 %v207, 112
    %v463 = vpop.permute.xlu0 %462
    %v466 = vsel %vm302, %v461, 0
    %468 = vmatprep.subr.mxu0 0.0
    %469 = vmatpush1.msra.mxu0 %v463
    %470 = vmatprep.subr.mxu0 0.0
    %471 = vmatpush1.msra.mxu0 0.0
    %472 = vmatprep.subr.mxu0 0.0
    %473 = vmatpush1.msra.mxu0 0.0
    %474 = vmatprep.subr.mxu0 0.0
    %475 = vmatpush1.msra.mxu0 0.0
    %476 = vmatprep.subr.mxu0 0.0
    %477 = vmatpush1.msra.mxu0 0.0
    %478 = vmatprep.subr.mxu0 0.0
    %479 = vmatpush1.msra.mxu0 0.0
    %480 = vmatprep.subr.mxu0 0.0
    %481 = vmatpush1.msra.mxu0 0.0
    %482 = vmatprep.subr.mxu0 0.0
    %483 = vmatpush1.msra.mxu0 0.0
    %484 = vmatprep.subr.mxu0 0.0
    %485 = vmatpush1.msra.mxu0 0.0
    %486 = vmatprep.subr.mxu0 0.0
    %487 = vmatpush1.msra.mxu0 0.0
    %488 = vmatprep.subr.mxu0 0.0
    %489 = vmatpush1.msra.mxu0 0.0
    %490 = vmatprep.subr.mxu0 0.0
    %491 = vmatpush1.msra.mxu0 0.0
    %492 = vmatprep.subr.mxu0 0.0
    %493 = vmatpush1.msra.mxu0 0.0
    %494 = vmatprep.subr.mxu0 0.0
    %495 = vmatpush1.msra.mxu0 0.0
    %496 = vmatprep.subr.mxu0 0.0
    %497 = vmatpush1.msra.mxu0 0.0
    %498 = vmatprep.subr.mxu0 0.0
    %499 = vmatpush1.msra.mxu0 0.0
    %500 = vmatprep.subr.mxu0 0.0
    %501 = vmatpush1.msra.mxu0 0.0
    %502 = vmatprep.subr.mxu0 0.0
    %503 = vmatpush1.msra.mxu0 0.0
    %504 = vmatprep.subr.mxu0 0.0
    %505 = vmatpush1.msra.mxu0 0.0
    %506 = vmatprep.subr.mxu0 0.0
    %507 = vmatpush1.msra.mxu0 0.0
    %508 = vmatprep.subr.mxu0 0.0
    %509 = vmatpush1.msra.mxu0 0.0
    %510 = vmatprep.subr.mxu0 0.0
    %511 = vmatpush1.msra.mxu0 0.0
    %512 = vmatprep.subr.mxu0 0.0
    %513 = vmatpush1.msra.mxu0 0.0
    %514 = vmatprep.subr.mxu0 0.0
    %515 = vmatpush1.msra.mxu0 0.0
    %516 = vmatprep.subr.mxu0 0.0
    %517 = vmatpush1.msra.mxu0 0.0
    %518 = vmatprep.subr.mxu0 0.0
    %519 = vmatpush1.msra.mxu0 0.0
    %520 = vmatprep.subr.mxu0 0.0
    %521 = vmatpush1.msra.mxu0 0.0
    %522 = vmatprep.subr.mxu0 0.0
    %523 = vmatpush1.msra.mxu0 0.0
    %524 = vmatprep.subr.mxu0 0.0
    %525 = vmatpush1.msra.mxu0 0.0
    %526 = vmatprep.subr.mxu0 0.0
    %527 = vmatpush1.msra.mxu0 0.0
    %528 = vmatprep.subr.mxu0 0.0
    %529 = vmatpush1.msra.mxu0 0.0
    %530 = vmatprep.subr.mxu0 0.0
    %531 = vmatpush1.msra.mxu0 0.0
    %532 = vmatprep.mubr.f32.mxu0 0.0
    %533 = vmatmul.mubr.f32.gmra.mrb[0].mxu0 %v466
    %v534 = vpop.f32.mrb[0].mxu0
    %v535 = vadd.f32 0.0, %v534
    %v536 = vpop.f32.mrb[0].mxu0
    %537 = vdwg.mxu0
    %s538 = scalar_lea.vmem [#allocation2], 4
    %539 = vst.msk [vmem:[%s538] sm:$0xf] %vm376, %v535
    // Predicated region
    $region26: #{tpu_custom_call.1} parent=1 // pred_check
      _
    $region27: #{tpu_custom_call.1} parent=1 // pred_check_branch
      %541 = sbr.rel (0) target = $region29
    $region28: #{tpu_custom_call.1} parent=1 // pred_region
      %s543 = ssub.s32 128, 128
      %544 = vsyncadd [#allocation3], %s543
      %s545 = sshll.u32 [#allocation2], 4
      %s546 = int_to_ptr.vmem [resolvable:$true] %s545
      %551 = dma.vmem_to_hbm [thread:$0]  %s546, 128, %s6, [#allocation3], 64, 64, 4
    $region29: #{tpu_custom_call.1} parent=1 // pred_fallthru
      _
    // Predicated region
    $region30: #{tpu_custom_call.1} parent=1 // pred_check
      _
    $region31: #{tpu_custom_call.1} parent=1 // pred_check_branch
      %553 = sbr.rel (0) target = $region33
    $region32: #{tpu_custom_call.1} parent=1 // pred_region
      %554 = dma.done [#allocation3], 128
    $region33: #{tpu_custom_call.1} parent=1 // pred_fallthru
      _
    %555 = vsyncpa [#allocation3], 1

</llo_original>
